<compile_context>
chip_gen: v6e
topology: v6e:2x2x1
jax: 0.10.0
libtpu: 0.0.40
codegen_flags: <defaults>
</compile_context>

<pallas_src>
import functools

import jax
import jax.numpy as jnp
from jax.experimental import pallas as pl
from jax.experimental.pallas import tpu as pltpu


def _param_copy_kernel(param_hbm_ref, out_hbm_ref, copy_sem):
    """forward(): out = param.  One HBM->HBM DMA, no VMEM round trip."""
    cp = pltpu.make_async_copy(param_hbm_ref, out_hbm_ref, copy_sem)
    cp.start()
    cp.wait()


@functools.lru_cache(maxsize=None)
def _build_forward(shape: tuple, dtype_name: str):
    """Build (once per shape/dtype) a jitted gridless DMA-copy pallas_call."""
    dtype = jnp.dtype(dtype_name)
    nbytes = int(dtype.itemsize)
    for d in shape:
        nbytes *= int(d)

    copy = pl.pallas_call(
        _param_copy_kernel,
        out_shape=jax.ShapeDtypeStruct(shape, dtype),
        # Raw HBM refs on both sides: no auto-DMA into VMEM, no tiling
        # constraints, works for any out_ch and any chip's VMEM budget.
        in_specs=[pl.BlockSpec(memory_space=pl.ANY)],
        out_specs=pl.BlockSpec(memory_space=pl.ANY),
        scratch_shapes=[pltpu.SemaphoreType.DMA(())],
        cost_estimate=pl.CostEstimate(
            flops=0, transcendentals=0, bytes_accessed=2 * nbytes),
    )
    return jax.jit(copy)


def parameter_forward(param: jax.Array) -> jax.Array:
    """Pallas equivalent of Parameter.forward(): returns the parameter tensor."""
    assert param.ndim == 2 and param.shape[0] == 1
    fwd = _build_forward(tuple(param.shape), str(param.dtype))
    return fwd(param)


class ParameterPallas:
    """Mirror of the PyTorch `Parameter` module using a Pallas DMA-copy kernel."""

    def __init__(self, out_ch: int, key: jax.Array):
        # Deterministic init matching torch.randn((1, out_ch)) * 0.01 semantics.
        self._param = (jax.random.normal(key, (1, out_ch), dtype=jnp.float32)
                       * jnp.float32(0.01))
        num_params = self._param.size
        print('[num parameters: {}]'.format(num_params))

    def __call__(self) -> jax.Array:
        # NOTE: the absolute-zero-overhead path is `return self._param`;
        # the Pallas DMA copy is kept to exercise the kernel path required here.
        return parameter_forward(self._param)


if __name__ == "__main__":
    key = jax.random.PRNGKey(0)
    out_ch = 32

    module = ParameterPallas(out_ch, key)
    out = module()
    out = jax.block_until_ready(out)

    # Correctness check: forward() must return the parameter exactly.
    assert out.shape == (1, out_ch)
    assert out.dtype == jnp.float32
    assert bool(jnp.array_equal(out, module._param))

    # Second call re-uses the cached, jitted pallas_call (no re-tracing).
    out2 = jax.block_until_ready(module())
    assert bool(jnp.array_equal(out2, module._param))

    print("KERNEL_OK")
</pallas_src>

<mosaic_0001>
module attributes {stable_mosaic.version = 11 : i64} {
  func.func @_param_copy_kernel(%arg0: memref<1x32xf32, #tpu.memory_space<any>>, %arg1: memref<1x32xf32, #tpu.memory_space<any>>, %arg2: memref<!tpu.dma_semaphore, #tpu.memory_space<semaphore_mem>>) attributes {dimension_semantics = [], scalar_prefetch = 0 : i64, scratch_operands = 1 : i64, tpu.core_type = #tpu.core_type<tc>} {
    tpu.enqueue_dma source(%arg0 : memref<1x32xf32, #tpu.memory_space<any>>) target(%arg1 : memref<1x32xf32, #tpu.memory_space<any>>) target_semaphore(%arg2 : memref<!tpu.dma_semaphore, #tpu.memory_space<semaphore_mem>>)
    tpu.wait_dma2 semaphore(%arg2 : memref<!tpu.dma_semaphore, #tpu.memory_space<semaphore_mem>>) src(%arg0 : memref<1x32xf32, #tpu.memory_space<any>>) dst(%arg1 : memref<1x32xf32, #tpu.memory_space<any>>)
    return
  }
}

</mosaic_0001>

<llo_original>
// kernel: tpu_custom_call.1
$region0: #{tpu_custom_call.1}
  #allocation0 [shape = 'u32[]', space=smem, size = 0x4, offset = 0x4, fixed_abs, tag = 'smem constant byte address 0x4 - core index']
  #allocation1 [shape = 'u32[144,128]{1,0:T(1,128)}', space=vmem, size = 0x12000, scoped, tag = 'internal scratch']
  #allocation2 [shape = 's32[1]{0}', space=sflag, size = 0x4, scoped, tag = 'scratch operand']
  #allocation3 [shape = 's32[]', space=sflag, size = 0x4, offset = 0, fixed_abs, tag = 'sflag constant byte address 0x0 - dummy sync flag']
  #allocation4 [shape = 'u32[0]{0}', space=smem, size = 0, offset = 0, fixed_abs, tag = 'smem constant byte address 0x0 - null']
  %s0 = inlined_call_operand.hbm [shape: f32[1,32], index: 0, kind: input, shape index: {}]
  %s1 = inlined_call_operand.hbm [shape: f32[1,32], index: 1, kind: output, shape index: {}]
  %s2 = sld [smem:[#allocation0]]
  $region2: #{tpu_custom_call.1} parent=0
    _
  %s4 = ssub.s32 1, %s2
  %s5 = scalar_select 0, %s4, %s2
  %s7 = sshll.u32 1, 14
  %s8 = sxor.u32 4294967295, %s7
  %12 = dma.general %s0, 16, %s1, [#allocation2], 131072, [#allocation4], 0, 0
  %s13 = smul.u32 1, 1
  %s14 = sshll.u32 %s13, 4
  %15 = dma.done [#allocation2], %s14
  %16 = vsyncmov [#allocation2]
  %s17 = vpop.sfrf %16
  %p18 = scmp.eq.s32.totalorder %s17, 0
  %p19 = pneg %p18
  %21 = shalt.err (%p19)

</llo_original>
